<compile_context>
chip_gen: v5e
topology: v5e:2x2
jax: 0.10.0
libtpu: 0.0.40
codegen_flags: <defaults>
</compile_context>

<pallas_src>
import math

import jax
import jax.numpy as jnp
from jax.experimental import pallas as pl
from jax.experimental.pallas import tpu as pltpu

_COMPUTE_DTYPE = jnp.bfloat16  # MXU-native matmul dtype; accumulation stays f32.


def _round_up(n, m):
    return ((n + m - 1) // m) * m


def _make_nac_kernel(num_layers):
    def kernel(x_ref, *refs):
        w_refs = refs[:num_layers]
        o_ref = refs[num_layers]
        act = x_ref[...].astype(_COMPUTE_DTYPE)
        for li in range(num_layers):  # static unroll; L is a trace-time constant
            acc = jnp.dot(act, w_refs[li][...], preferred_element_type=jnp.float32)
            # Keep the final accumulator in f32 for the store; recast
            # intermediates to bf16 so the next matmul's LHS is MXU-native.
            act = acc if li == num_layers - 1 else acc.astype(_COMPUTE_DTYPE)
        o_ref[...] = act.astype(o_ref.dtype)

    return kernel


def _nac_forward_impl(x, params, tb_max, single_buffer_weights):
    batch, in_dim = x.shape
    num_layers = len(params)
    out_dim = params[-1][0].shape[0]

    # ---- Gate + transpose + per-layer lane-dense pad (params only, once/fwd) ----
    w_arrays = []
    for (w_hat, m_hat) in params:
        d_out, d_in = w_hat.shape
        gate_t = (jnp.tanh(w_hat) * jax.nn.sigmoid(m_hat)).T.astype(_COMPUTE_DTYPE)
        din_p, dout_p = _round_up(d_in, 128), _round_up(d_out, 128)
        if (din_p, dout_p) != (d_in, d_out):
            # Zero padding is exact: padded rows/cols contribute 0 to the matmul.
            gate_t = (jnp.zeros((din_p, dout_p), _COMPUTE_DTYPE)
                      .at[:d_in, :d_out].set(gate_t))
        w_arrays.append(gate_t)
    d_in_pad = w_arrays[0].shape[0]
    d_out_pad = w_arrays[-1].shape[1]

    # ---- Batch tiling ----
    batch_pad = _round_up(batch, 8)
    if batch_pad >= 16:
        # At least 2 batch tiles so the "parallel" axis can use both v7x TCs.
        tb = min(tb_max, _round_up(pl.cdiv(batch_pad, 2), 8))
    else:
        tb = batch_pad
    batch_pad = _round_up(batch_pad, tb)
    grid = (batch_pad // tb,)

    # ---- Input: skip the padded copy when already (8,128)-aligned ----
    if batch_pad == batch and d_in_pad == in_dim:
        x_in = x  # fed directly; kernel casts per tile (no extra HBM pass)
    else:
        x_in = (jnp.zeros((batch_pad, d_in_pad), _COMPUTE_DTYPE)
                .at[:batch, :in_dim].set(x.astype(_COMPUTE_DTYPE)))

    # ---- BlockSpecs ----
    x_spec = pl.BlockSpec((tb, d_in_pad), lambda i: (i, 0))
    if single_buffer_weights:
        # Constant block index -> weights stay resident; single-buffer them so
        # the resident footprint is 1x (not 2x) on v7x's smaller VMEM.
        w_specs = [pl.BlockSpec(w.shape, lambda i: (0, 0),
                                pipeline_mode=pl.Buffered(1))
                   for w in w_arrays]
    else:
        w_specs = [pl.BlockSpec(w.shape, lambda i: (0, 0)) for w in w_arrays]
    out_spec = pl.BlockSpec((tb, d_out_pad), lambda i: (i, 0))

    # ---- Explicit VMEM budget (scoped defaults sit far below physical) ----
    w_bytes = sum(int(w.size) * w.dtype.itemsize for w in w_arrays)
    w_bufs = 1 if single_buffer_weights else 2
    act_bytes = (2 * tb * d_in_pad * jnp.dtype(x_in.dtype).itemsize
                 + 2 * tb * d_out_pad * 4)
    inter_bytes = max(w.shape[1] for w in w_arrays) * tb * (4 + jnp.dtype(_COMPUTE_DTYPE).itemsize)
    est = w_bytes * w_bufs + act_bytes + inter_bytes
    try:
        vmem_cap = int(pltpu.get_tpu_info().vmem_capacity_bytes)
    except Exception:
        vmem_cap = 64 << 20  # conservative (v7x per-TC VMEM)
    vmem_limit = int(min(vmem_cap, max(2 * est + (4 << 20), 16 << 20)))

    out_pad = pl.pallas_call(
        _make_nac_kernel(num_layers),
        out_shape=jax.ShapeDtypeStruct((batch_pad, d_out_pad), jnp.float32),
        grid=grid,
        in_specs=[x_spec] + w_specs,
        out_specs=out_spec,
        compiler_params=pltpu.CompilerParams(
            dimension_semantics=("parallel",),  # batch tiles are independent
            vmem_limit_bytes=vmem_limit,
        ),
    )(x_in, *w_arrays)

    return out_pad[:batch, :out_dim].astype(x.dtype)


_nac_forward_jit = jax.jit(_nac_forward_impl, static_argnums=(2, 3))

# None = undecided, True = Buffered(1) weights work, False = fall back to default.
_WEIGHT_BUFFER_MODE = None


def nac_forward(x, params, *, tb_max=1024):
    """Fused NAC forward. Probes single-buffered resident weights once and
    falls back to default double buffering if this jax/libtpu rejects it."""
    global _WEIGHT_BUFFER_MODE
    if _WEIGHT_BUFFER_MODE is None:
        try:
            out = jax.block_until_ready(_nac_forward_jit(x, params, tb_max, True))
            _WEIGHT_BUFFER_MODE = True
            return out
        except Exception:
            _WEIGHT_BUFFER_MODE = False
    return _nac_forward_jit(x, params, tb_max, _WEIGHT_BUFFER_MODE)


def init_nac_params(key, num_layers, in_dim, hidden_dim, out_dim):
    """kaiming_uniform_(a=sqrt(5)) init matching the PyTorch module:
    weight (out_dim, in_dim) -> bound = 1/sqrt(fan_in)."""
    params = []
    for i in range(num_layers):
        d_in = in_dim if i == 0 else hidden_dim
        d_out = out_dim if i == num_layers - 1 else hidden_dim
        bound = 1.0 / math.sqrt(d_in)
        key, k1, k2 = jax.random.split(key, 3)
        w_hat = jax.random.uniform(k1, (d_out, d_in), jnp.float32, -bound, bound)
        m_hat = jax.random.uniform(k2, (d_out, d_in), jnp.float32, -bound, bound)
        params.append((w_hat, m_hat))
    return tuple(params)


def nac_forward_ref(x, params):
    """Pure-JAX f32 reference of the PyTorch forward."""
    out = x
    for (w_hat, m_hat) in params:
        w = jnp.tanh(w_hat) * jax.nn.sigmoid(m_hat)
        out = out @ w.T
    return out


def nac_forward_ref_bf16(x, params):
    """Reference that mimics the kernel's bf16-operand / f32-accumulate math."""
    out = x.astype(_COMPUTE_DTYPE)
    for i, (w_hat, m_hat) in enumerate(params):
        w = (jnp.tanh(w_hat) * jax.nn.sigmoid(m_hat)).astype(_COMPUTE_DTYPE)
        out = jnp.dot(out, w.T, preferred_element_type=jnp.float32)
        if i < len(params) - 1:
            out = out.astype(_COMPUTE_DTYPE)
    return out


if __name__ == "__main__":
    num_layers = 3
    in_dim = 16
    hidden_dim = 32
    out_dim = 8
    batch = 8

    key = jax.random.PRNGKey(0)
    key, xk = jax.random.split(key)
    x = jax.random.normal(xk, (batch, in_dim), jnp.float32)

    params = init_nac_params(key, num_layers, in_dim, hidden_dim, out_dim)

    y = jax.block_until_ready(nac_forward(x, params))
    assert y.shape == (batch, out_dim)

    # Loose check vs the exact f32 PyTorch-equivalent (bf16 MXU operands).
    y_ref = nac_forward_ref(x, params)
    assert jnp.allclose(y, y_ref, atol=2e-3, rtol=5e-2), (y, y_ref)

    # Tight check vs a reference using the same bf16-operand / f32-accum math.
    y_ref_bf16 = nac_forward_ref_bf16(x, params)
    assert jnp.allclose(y, y_ref_bf16, atol=1e-4, rtol=1e-2), (y, y_ref_bf16)

    print("KERNEL_OK")
</pallas_src>

<mosaic_0001>
module attributes {stable_mosaic.version = 11 : i64} {
  func.func @kernel(%arg0: i32, %arg1: memref<8x128xbf16, #tpu.memory_space<vmem>>, %arg2: memref<128x128xbf16, #tpu.memory_space<vmem>>, %arg3: memref<128x128xbf16, #tpu.memory_space<vmem>>, %arg4: memref<128x128xbf16, #tpu.memory_space<vmem>>, %arg5: memref<8x128xf32, #tpu.memory_space<vmem>>) attributes {dimension_semantics = [#tpu.dimension_semantics<parallel>], iteration_bounds = array<i64: 1>, scalar_prefetch = 0 : i64, scratch_operands = 0 : i64, tpu.core_type = #tpu.core_type<tc>, window_params = [{transform_indices = @transform_0, window_bounds = array<i64: 8, 128>}, {pipeline_mode = #tpu.pipeline_mode<synchronous>, transform_indices = @transform_1, window_bounds = array<i64: 128, 128>}, {pipeline_mode = #tpu.pipeline_mode<synchronous>, transform_indices = @transform_2, window_bounds = array<i64: 128, 128>}, {pipeline_mode = #tpu.pipeline_mode<synchronous>, transform_indices = @transform_3, window_bounds = array<i64: 128, 128>}, {transform_indices = @transform_4, window_bounds = array<i64: 8, 128>}]} {
    %c0 = arith.constant 0 : index
    %c0_0 = arith.constant 0 : index
    %0 = vector.load %arg1[%c0, %c0_0] : memref<8x128xbf16, #tpu.memory_space<vmem>>, vector<8x128xbf16>
    %c0_1 = arith.constant 0 : index
    %c0_2 = arith.constant 0 : index
    %1 = vector.load %arg2[%c0_1, %c0_2] : memref<128x128xbf16, #tpu.memory_space<vmem>>, vector<128x128xbf16>
    %cst = arith.constant dense<0.000000e+00> : vector<8x128xf32>
    %2 = tpu.matmul %0, %1, %cst {dimension_numbers = #tpu.dot_dimension_numbers<[1], [0], [0], [1], [0, 0, 1, 1], [], []>} : vector<8x128xbf16>, vector<128x128xbf16>, vector<8x128xf32> -> vector<8x128xf32>
    %3 = arith.truncf %2 : vector<8x128xf32> to vector<8x128xbf16>
    %c0_3 = arith.constant 0 : index
    %c0_4 = arith.constant 0 : index
    %4 = vector.load %arg3[%c0_3, %c0_4] : memref<128x128xbf16, #tpu.memory_space<vmem>>, vector<128x128xbf16>
    %cst_5 = arith.constant dense<0.000000e+00> : vector<8x128xf32>
    %5 = tpu.matmul %3, %4, %cst_5 {dimension_numbers = #tpu.dot_dimension_numbers<[1], [0], [0], [1], [0, 0, 1, 1], [], []>} : vector<8x128xbf16>, vector<128x128xbf16>, vector<8x128xf32> -> vector<8x128xf32>
    %6 = arith.truncf %5 : vector<8x128xf32> to vector<8x128xbf16>
    %c0_6 = arith.constant 0 : index
    %c0_7 = arith.constant 0 : index
    %7 = vector.load %arg4[%c0_6, %c0_7] : memref<128x128xbf16, #tpu.memory_space<vmem>>, vector<128x128xbf16>
    %cst_8 = arith.constant dense<0.000000e+00> : vector<8x128xf32>
    %8 = tpu.matmul %6, %7, %cst_8 {dimension_numbers = #tpu.dot_dimension_numbers<[1], [0], [0], [1], [0, 0, 1, 1], [], []>} : vector<8x128xbf16>, vector<128x128xbf16>, vector<8x128xf32> -> vector<8x128xf32>
    %c0_9 = arith.constant 0 : index
    %c0_10 = arith.constant 0 : index
    %9 = vector.load %arg5[%c0_9, %c0_10] : memref<8x128xf32, #tpu.memory_space<vmem>>, vector<8x128xf32>
    tpu.vector_store %arg5[%c0_9, %c0_10], %8 {strides = array<i32>} : memref<8x128xf32, #tpu.memory_space<vmem>>, vector<8x128xf32>,
    return
  }
  func.func @transform_0(%arg0: i32) -> (i32, i32) {
    %c0_i32 = arith.constant 0 : i32
    %c0_i32_0 = arith.constant 0 : i32
    return %arg0, %c0_i32 : i32, i32
  }
  func.func @transform_1(%arg0: i32) -> (i32, i32) {
    %c0_i32 = arith.constant 0 : i32
    %c0_i32_0 = arith.constant 0 : i32
    %c0_i32_1 = arith.constant 0 : i32
    return %c0_i32, %c0_i32_0 : i32, i32
  }
  func.func @transform_2(%arg0: i32) -> (i32, i32) {
    %c0_i32 = arith.constant 0 : i32
    %c0_i32_0 = arith.constant 0 : i32
    %c0_i32_1 = arith.constant 0 : i32
    return %c0_i32, %c0_i32_0 : i32, i32
  }
  func.func @transform_3(%arg0: i32) -> (i32, i32) {
    %c0_i32 = arith.constant 0 : i32
    %c0_i32_0 = arith.constant 0 : i32
    %c0_i32_1 = arith.constant 0 : i32
    return %c0_i32, %c0_i32_0 : i32, i32
  }
  func.func @transform_4(%arg0: i32) -> (i32, i32) {
    %c0_i32 = arith.constant 0 : i32
    %c0_i32_0 = arith.constant 0 : i32
    return %arg0, %c0_i32 : i32, i32
  }
}

module attributes {stable_mosaic.version = 11 : i64} {
  func.func @kernel(%arg0: i32, %arg1: memref<8x128xbf16, #tpu.memory_space<vmem>>, %arg2: memref<128x128xbf16, #tpu.memory_space<vmem>>, %arg3: memref<128x128xbf16, #tpu.memory_space<vmem>>, %arg4: memref<128x128xbf16, #tpu.memory_space<vmem>>, %arg5: memref<8x128xf32, #tpu.memory_space<vmem>>) attributes {dimension_semantics = [#tpu.dimension_semantics<parallel>], iteration_bounds = array<i64: 1>, scalar_prefetch = 0 : i64, scratch_operands = 0 : i64, tpu.core_type = #tpu.core_type<tc>, window_params = [{transform_indices = @transform_0, window_bounds = array<i64: 8, 128>}, {pipeline_mode = #tpu.pipeline_mode<synchronous>, transform_indices = @transform_1, window_bounds = array<i64: 128, 128>}, {pipeline_mode = #tpu.pipeline_mode<synchronous>, transform_indices = @transform_2, window_bounds = array<i64: 128, 128>}, {pipeline_mode = #tpu.pipeline_mode<synchronous>, transform_indices = @transform_3, window_bounds = array<i64: 128, 128>}, {transform_indices = @transform_4, window_bounds = array<i64: 8, 128>}]} {
    %c0 = arith.constant 0 : index
    %c0_0 = arith.constant 0 : index
    %0 = vector.load %arg1[%c0, %c0_0] : memref<8x128xbf16, #tpu.memory_space<vmem>>, vector<8x128xbf16>
    %c0_1 = arith.constant 0 : index
    %c0_2 = arith.constant 0 : index
    %1 = vector.load %arg2[%c0_1, %c0_2] : memref<128x128xbf16, #tpu.memory_space<vmem>>, vector<128x128xbf16>
    %cst = arith.constant dense<0.000000e+00> : vector<8x128xf32>
    %2 = tpu.matmul %0, %1, %cst {dimension_numbers = #tpu.dot_dimension_numbers<[1], [0], [0], [1], [0, 0, 1, 1], [], []>} : vector<8x128xbf16>, vector<128x128xbf16>, vector<8x128xf32> -> vector<8x128xf32>
    %3 = arith.truncf %2 : vector<8x128xf32> to vector<8x128xbf16>
    %c0_3 = arith.constant 0 : index
    %c0_4 = arith.constant 0 : index
    %4 = vector.load %arg3[%c0_3, %c0_4] : memref<128x128xbf16, #tpu.memory_space<vmem>>, vector<128x128xbf16>
    %cst_5 = arith.constant dense<0.000000e+00> : vector<8x128xf32>
    %5 = tpu.matmul %3, %4, %cst_5 {dimension_numbers = #tpu.dot_dimension_numbers<[1], [0], [0], [1], [0, 0, 1, 1], [], []>} : vector<8x128xbf16>, vector<128x128xbf16>, vector<8x128xf32> -> vector<8x128xf32>
    %6 = arith.truncf %5 : vector<8x128xf32> to vector<8x128xbf16>
    %c0_6 = arith.constant 0 : index
    %c0_7 = arith.constant 0 : index
    %7 = vector.load %arg4[%c0_6, %c0_7] : memref<128x128xbf16, #tpu.memory_space<vmem>>, vector<128x128xbf16>
    %cst_8 = arith.constant dense<0.000000e+00> : vector<8x128xf32>
    %8 = tpu.matmul %6, %7, %cst_8 {dimension_numbers = #tpu.dot_dimension_numbers<[1], [0], [0], [1], [0, 0, 1, 1], [], []>} : vector<8x128xbf16>, vector<128x128xbf16>, vector<8x128xf32> -> vector<8x128xf32>
    %c0_9 = arith.constant 0 : index
    %c0_10 = arith.constant 0 : index
    %9 = vector.load %arg5[%c0_9, %c0_10] : memref<8x128xf32, #tpu.memory_space<vmem>>, vector<8x128xf32>
    tpu.vector_store %arg5[%c0_9, %c0_10], %8 {strides = array<i32>} : memref<8x128xf32, #tpu.memory_space<vmem>>, vector<8x128xf32>,
    return
  }
  func.func @transform_0(%arg0: i32) -> (i32, i32) {
    %c0_i32 = arith.constant 0 : i32
    %c0_i32_0 = arith.constant 0 : i32
    return %arg0, %c0_i32 : i32, i32
  }
  func.func @transform_1(%arg0: i32) -> (i32, i32) {
    %c0_i32 = arith.constant 0 : i32
    %c0_i32_0 = arith.constant 0 : i32
    %c0_i32_1 = arith.constant 0 : i32
    return %c0_i32, %c0_i32_0 : i32, i32
  }
  func.func @transform_2(%arg0: i32) -> (i32, i32) {
    %c0_i32 = arith.constant 0 : i32
    %c0_i32_0 = arith.constant 0 : i32
    %c0_i32_1 = arith.constant 0 : i32
    return %c0_i32, %c0_i32_0 : i32, i32
  }
  func.func @transform_3(%arg0: i32) -> (i32, i32) {
    %c0_i32 = arith.constant 0 : i32
    %c0_i32_0 = arith.constant 0 : i32
    %c0_i32_1 = arith.constant 0 : i32
    return %c0_i32, %c0_i32_0 : i32, i32
  }
  func.func @transform_4(%arg0: i32) -> (i32, i32) {
    %c0_i32 = arith.constant 0 : i32
    %c0_i32_0 = arith.constant 0 : i32
    return %arg0, %c0_i32 : i32, i32
  }
}

</mosaic_0001>

<llo_original>
// kernel: _nac_forward_impl.1
$region0: #{_nac_forward_impl.1}
  #allocation0 [shape = 'u32[]', space=smem, size = 0x4, offset = 0x4, fixed_abs, tag = 'smem constant byte address 0x4 - core index']
  #allocation1 [shape = 'u32[72,128]{1,0:T(1,128)}', space=vmem, size = 0x9000, scoped, tag = 'internal scratch']
  %s0 = inlined_call_operand.vmem [shape: bf16[8,128], index: 0, kind: input, shape index: {}]
  %s1 = inlined_call_operand.vmem [shape: bf16[128,128], index: 1, kind: input, shape index: {}]
  %s2 = inlined_call_operand.vmem [shape: bf16[128,128], index: 2, kind: input, shape index: {}]
  %s3 = inlined_call_operand.vmem [shape: bf16[128,128], index: 3, kind: input, shape index: {}]
  %s4 = inlined_call_operand.hbm [shape: f32[8,128], index: 4, kind: output, shape index: {}]
  %s5 = sld [smem:[#allocation0]]
  $region26: #{_nac_forward_impl.1} parent=0
    _
  %s7 = ssub.s32 1, %s5
  %s8 = scalar_select 0, %s7, %s5
  $region1: #{_nac_forward_impl.1} parent=0
    #allocation2 [shape = 'u8[4096]{0}', space=vmem, size = 0x1000, scoped, tag = 'output window, operand 0, single buffered']
    #allocation3 [shape = 's32[1]{0}', space=sflag, size = 0x4, scoped, tag = 'scoped memory for _nac_forward_impl.1']
    %9 = vsyncpa [#allocation3], 0
    // Predicated region
    $region2: #{_nac_forward_impl.1} parent=1 // pred_check
      _
    $region3: #{_nac_forward_impl.1} parent=1 // pred_check_branch
      %11 = sbr.rel (0) target = $region5
    $region4: #{_nac_forward_impl.1} parent=1 // pred_region
      _
    $region5: #{_nac_forward_impl.1} parent=1 // pred_fallthru
      _
    // Predicated region
    $region6: #{_nac_forward_impl.1} parent=1 // pred_check
      _
    $region7: #{_nac_forward_impl.1} parent=1 // pred_check_branch
      %13 = sbr.rel (0) target = $region9
    $region8: #{_nac_forward_impl.1} parent=1 // pred_region
      _
    $region9: #{_nac_forward_impl.1} parent=1 // pred_fallthru
      _
    // Predicated region
    $region10: #{_nac_forward_impl.1} parent=1 // pred_check
      _
    $region11: #{_nac_forward_impl.1} parent=1 // pred_check_branch
      %15 = sbr.rel (0) target = $region13
    $region12: #{_nac_forward_impl.1} parent=1 // pred_region
      _
    $region13: #{_nac_forward_impl.1} parent=1 // pred_fallthru
      _
    // Predicated region
    $region14: #{_nac_forward_impl.1} parent=1 // pred_check
      _
    $region15: #{_nac_forward_impl.1} parent=1 // pred_check_branch
      %17 = sbr.rel (0) target = $region17
    $region16: #{_nac_forward_impl.1} parent=1 // pred_region
      _
    $region17: #{_nac_forward_impl.1} parent=1 // pred_fallthru
      _
    %v18 = vld [vmem:[%s0] sm:$0xf]
    %v19 = vld [vmem:[%s1] sm:$0xf]
    %v20 = vld [vmem:[%s1 + $0x4] sm:$0xf]
    %v21 = vld [vmem:[%s1 + $0x8] sm:$0xf]
    %v22 = vld [vmem:[%s1 + $0xc] sm:$0xf]
    %v23 = vld [vmem:[%s1 + $0x10] sm:$0xf]
    %v24 = vld [vmem:[%s1 + $0x14] sm:$0xf]
    %v25 = vld [vmem:[%s1 + $0x18] sm:$0xf]
    %v26 = vld [vmem:[%s1 + $0x1c] sm:$0xf]
    %v27 = vld [vmem:[%s1 + $0x20] sm:$0xf]
    %v28 = vld [vmem:[%s1 + $0x24] sm:$0xf]
    %v29 = vld [vmem:[%s1 + $0x28] sm:$0xf]
    %v30 = vld [vmem:[%s1 + $0x2c] sm:$0xf]
    %v31 = vld [vmem:[%s1 + $0x30] sm:$0xf]
    %v32 = vld [vmem:[%s1 + $0x34] sm:$0xf]
    %v33 = vld [vmem:[%s1 + $0x38] sm:$0xf]
    %v34 = vld [vmem:[%s1 + $0x3c] sm:$0xf]
    %v51 = vunpack.c.l.b16 %v19
    %v52 = vunpack.c.l.b16 %v20
    %v53 = vunpack.c.l.b16 %v21
    %v54 = vunpack.c.l.b16 %v22
    %v55 = vunpack.c.l.b16 %v23
    %v56 = vunpack.c.l.b16 %v24
    %v57 = vunpack.c.l.b16 %v25
    %v58 = vunpack.c.l.b16 %v26
    %v59 = vunpack.c.l.b16 %v27
    %v60 = vunpack.c.l.b16 %v28
    %v61 = vunpack.c.l.b16 %v29
    %v62 = vunpack.c.l.b16 %v30
    %v63 = vunpack.c.l.b16 %v31
    %v64 = vunpack.c.l.b16 %v32
    %v65 = vunpack.c.l.b16 %v33
    %v66 = vunpack.c.l.b16 %v34
    %v67 = vpack.c.b16 %v52, %v51
    %v68 = vpack.c.b16 %v54, %v53
    %v69 = vpack.c.b16 %v56, %v55
    %v70 = vpack.c.b16 %v58, %v57
    %v71 = vpack.c.b16 %v60, %v59
    %v72 = vpack.c.b16 %v62, %v61
    %v73 = vpack.c.b16 %v64, %v63
    %v74 = vpack.c.b16 %v66, %v65
    %83 = vmatpush.bf16.msra.mxu0 %v74
    %84 = vmatpush.bf16.msra.mxu0 %v73
    %85 = vmatpush.bf16.msra.mxu0 %v72
    %86 = vmatpush.bf16.msra.mxu0 %v71
    %87 = vmatpush.bf16.msra.mxu0 %v70
    %88 = vmatpush.bf16.msra.mxu0 %v69
    %89 = vmatpush.bf16.msra.mxu0 %v68
    %90 = vmatpush.bf16.msra.mxu0 %v67
    %91 = vmatmul.bf16.gmra.mxu0 %v18
    %v92 = vpop.f32.mrf.mxu0
    %v93 = vadd.f32 0.0, %v92
    %v94 = vpop.f32.mrf.mxu0
    %95 = vdwg.mxu0
    %v96 = vpack.c.bf16 %v93, %v93
    %v97 = vld [vmem:[%s2] sm:$0xf]
    %v98 = vld [vmem:[%s2 + $0x4] sm:$0xf]
    %v99 = vld [vmem:[%s2 + $0x8] sm:$0xf]
    %v100 = vld [vmem:[%s2 + $0xc] sm:$0xf]
    %v101 = vld [vmem:[%s2 + $0x10] sm:$0xf]
    %v102 = vld [vmem:[%s2 + $0x14] sm:$0xf]
    %v103 = vld [vmem:[%s2 + $0x18] sm:$0xf]
    %v104 = vld [vmem:[%s2 + $0x1c] sm:$0xf]
    %v105 = vld [vmem:[%s2 + $0x20] sm:$0xf]
    %v106 = vld [vmem:[%s2 + $0x24] sm:$0xf]
    %v107 = vld [vmem:[%s2 + $0x28] sm:$0xf]
    %v108 = vld [vmem:[%s2 + $0x2c] sm:$0xf]
    %v109 = vld [vmem:[%s2 + $0x30] sm:$0xf]
    %v110 = vld [vmem:[%s2 + $0x34] sm:$0xf]
    %v111 = vld [vmem:[%s2 + $0x38] sm:$0xf]
    %v112 = vld [vmem:[%s2 + $0x3c] sm:$0xf]
    %v129 = vunpack.c.l.b16 %v97
    %v130 = vunpack.c.l.b16 %v98
    %v131 = vunpack.c.l.b16 %v99
    %v132 = vunpack.c.l.b16 %v100
    %v133 = vunpack.c.l.b16 %v101
    %v134 = vunpack.c.l.b16 %v102
    %v135 = vunpack.c.l.b16 %v103
    %v136 = vunpack.c.l.b16 %v104
    %v137 = vunpack.c.l.b16 %v105
    %v138 = vunpack.c.l.b16 %v106
    %v139 = vunpack.c.l.b16 %v107
    %v140 = vunpack.c.l.b16 %v108
    %v141 = vunpack.c.l.b16 %v109
    %v142 = vunpack.c.l.b16 %v110
    %v143 = vunpack.c.l.b16 %v111
    %v144 = vunpack.c.l.b16 %v112
    %v145 = vpack.c.b16 %v130, %v129
    %v146 = vpack.c.b16 %v132, %v131
    %v147 = vpack.c.b16 %v134, %v133
    %v148 = vpack.c.b16 %v136, %v135
    %v149 = vpack.c.b16 %v138, %v137
    %v150 = vpack.c.b16 %v140, %v139
    %v151 = vpack.c.b16 %v142, %v141
    %v152 = vpack.c.b16 %v144, %v143
    %161 = vmatpush.bf16.msra.mxu0 %v152
    %162 = vmatpush.bf16.msra.mxu0 %v151
    %163 = vmatpush.bf16.msra.mxu0 %v150
    %164 = vmatpush.bf16.msra.mxu0 %v149
    %165 = vmatpush.bf16.msra.mxu0 %v148
    %166 = vmatpush.bf16.msra.mxu0 %v147
    %167 = vmatpush.bf16.msra.mxu0 %v146
    %168 = vmatpush.bf16.msra.mxu0 %v145
    %169 = vmatmul.bf16.gmra.mxu0 %v96
    %v170 = vpop.f32.mrf.mxu0
    %v171 = vadd.f32 0.0, %v170
    %v172 = vpop.f32.mrf.mxu0
    %173 = vdwg.mxu0
    %v174 = vpack.c.bf16 %v171, %v171
    %v175 = vld [vmem:[%s3] sm:$0xf]
    %v176 = vld [vmem:[%s3 + $0x4] sm:$0xf]
    %v177 = vld [vmem:[%s3 + $0x8] sm:$0xf]
    %v178 = vld [vmem:[%s3 + $0xc] sm:$0xf]
    %v179 = vld [vmem:[%s3 + $0x10] sm:$0xf]
    %v180 = vld [vmem:[%s3 + $0x14] sm:$0xf]
    %v181 = vld [vmem:[%s3 + $0x18] sm:$0xf]
    %v182 = vld [vmem:[%s3 + $0x1c] sm:$0xf]
    %v183 = vld [vmem:[%s3 + $0x20] sm:$0xf]
    %v184 = vld [vmem:[%s3 + $0x24] sm:$0xf]
    %v185 = vld [vmem:[%s3 + $0x28] sm:$0xf]
    %v186 = vld [vmem:[%s3 + $0x2c] sm:$0xf]
    %v187 = vld [vmem:[%s3 + $0x30] sm:$0xf]
    %v188 = vld [vmem:[%s3 + $0x34] sm:$0xf]
    %v189 = vld [vmem:[%s3 + $0x38] sm:$0xf]
    %v190 = vld [vmem:[%s3 + $0x3c] sm:$0xf]
    %v207 = vunpack.c.l.b16 %v175
    %v208 = vunpack.c.l.b16 %v176
    %v209 = vunpack.c.l.b16 %v177
    %v210 = vunpack.c.l.b16 %v178
    %v211 = vunpack.c.l.b16 %v179
    %v212 = vunpack.c.l.b16 %v180
    %v213 = vunpack.c.l.b16 %v181
    %v214 = vunpack.c.l.b16 %v182
    %v215 = vunpack.c.l.b16 %v183
    %v216 = vunpack.c.l.b16 %v184
    %v217 = vunpack.c.l.b16 %v185
    %v218 = vunpack.c.l.b16 %v186
    %v219 = vunpack.c.l.b16 %v187
    %v220 = vunpack.c.l.b16 %v188
    %v221 = vunpack.c.l.b16 %v189
    %v222 = vunpack.c.l.b16 %v190
    %v223 = vpack.c.b16 %v208, %v207
    %v224 = vpack.c.b16 %v210, %v209
    %v225 = vpack.c.b16 %v212, %v211
    %v226 = vpack.c.b16 %v214, %v213
    %v227 = vpack.c.b16 %v216, %v215
    %v228 = vpack.c.b16 %v218, %v217
    %v229 = vpack.c.b16 %v220, %v219
    %v230 = vpack.c.b16 %v222, %v221
    %239 = vmatpush.bf16.msra.mxu0 %v230
    %240 = vmatpush.bf16.msra.mxu0 %v229
    %241 = vmatpush.bf16.msra.mxu0 %v228
    %242 = vmatpush.bf16.msra.mxu0 %v227
    %243 = vmatpush.bf16.msra.mxu0 %v226
    %244 = vmatpush.bf16.msra.mxu0 %v225
    %245 = vmatpush.bf16.msra.mxu0 %v224
    %246 = vmatpush.bf16.msra.mxu0 %v223
    %247 = vmatmul.bf16.gmra.mxu0 %v174
    %v248 = vpop.f32.mrf.mxu0
    %v249 = vadd.f32 0.0, %v248
    %v250 = vpop.f32.mrf.mxu0
    %251 = vdwg.mxu0
    %252 = vst [vmem:[#allocation2] sm:$0xff] %v249
    // Predicated region
    $region18: #{_nac_forward_impl.1} parent=1 // pred_check
      _
    $region19: #{_nac_forward_impl.1} parent=1 // pred_check_branch
      %254 = sbr.rel (0) target = $region21
    $region20: #{_nac_forward_impl.1} parent=1 // pred_region
      %256 = vsyncadd [#allocation3], 0
      %s258 = sshll.u32 [#allocation2], 4
      %s259 = int_to_ptr.vmem [resolvable:$true] %s258
      %s260 = sshll.u32 %s4, 4
      %s261 = int_to_ptr.hbm [resolvable:$true] %s260
      %263 = dma.vmem_to_hbm [thread:$0]  %s259, 128, %s261, [#allocation3]
    $region21: #{_nac_forward_impl.1} parent=1 // pred_fallthru
      _
    // Predicated region
    $region22: #{_nac_forward_impl.1} parent=1 // pred_check
      _
    $region23: #{_nac_forward_impl.1} parent=1 // pred_check_branch
      %265 = sbr.rel (0) target = $region25
    $region24: #{_nac_forward_impl.1} parent=1 // pred_region
      %267 = dma.done [#allocation3], 128
    $region25: #{_nac_forward_impl.1} parent=1 // pred_fallthru
      _
    %268 = vsyncpa [#allocation3], 1

// kernel: _nac_forward_impl.1
$region0: #{_nac_forward_impl.1}
  #allocation0 [shape = 'u32[]', space=smem, size = 0x4, offset = 0x4, fixed_abs, tag = 'smem constant byte address 0x4 - core index']
  #allocation1 [shape = 'u32[72,128]{1,0:T(1,128)}', space=vmem, size = 0x9000, scoped, tag = 'internal scratch']
  %s0 = inlined_call_operand.vmem [shape: bf16[8,128], index: 0, kind: input, shape index: {}]
  %s1 = inlined_call_operand.vmem [shape: bf16[128,128], index: 1, kind: input, shape index: {}]
  %s2 = inlined_call_operand.vmem [shape: bf16[128,128], index: 2, kind: input, shape index: {}]
  %s3 = inlined_call_operand.vmem [shape: bf16[128,128], index: 3, kind: input, shape index: {}]
  %s4 = inlined_call_operand.hbm [shape: f32[8,128], index: 4, kind: output, shape index: {}]
  %s5 = sld [smem:[#allocation0]]
  $region26: #{_nac_forward_impl.1} parent=0
    _
  %s7 = ssub.s32 1, %s5
  %s8 = scalar_select 0, %s7, %s5
  $region1: #{_nac_forward_impl.1} parent=0
    #allocation2 [shape = 'u8[4096]{0}', space=vmem, size = 0x1000, scoped, tag = 'output window, operand 0, single buffered']
    #allocation3 [shape = 's32[1]{0}', space=sflag, size = 0x4, scoped, tag = 'scoped memory for _nac_forward_impl.1']
    %9 = vsyncpa [#allocation3], 0
    // Predicated region
    $region2: #{_nac_forward_impl.1} parent=1 // pred_check
      _
    $region3: #{_nac_forward_impl.1} parent=1 // pred_check_branch
      %11 = sbr.rel (0) target = $region5
    $region4: #{_nac_forward_impl.1} parent=1 // pred_region
      _
    $region5: #{_nac_forward_impl.1} parent=1 // pred_fallthru
      _
    // Predicated region
    $region6: #{_nac_forward_impl.1} parent=1 // pred_check
      _
    $region7: #{_nac_forward_impl.1} parent=1 // pred_check_branch
      %13 = sbr.rel (0) target = $region9
    $region8: #{_nac_forward_impl.1} parent=1 // pred_region
      _
    $region9: #{_nac_forward_impl.1} parent=1 // pred_fallthru
      _
    // Predicated region
    $region10: #{_nac_forward_impl.1} parent=1 // pred_check
      _
    $region11: #{_nac_forward_impl.1} parent=1 // pred_check_branch
      %15 = sbr.rel (0) target = $region13
    $region12: #{_nac_forward_impl.1} parent=1 // pred_region
      _
    $region13: #{_nac_forward_impl.1} parent=1 // pred_fallthru
      _
    // Predicated region
    $region14: #{_nac_forward_impl.1} parent=1 // pred_check
      _
    $region15: #{_nac_forward_impl.1} parent=1 // pred_check_branch
      %17 = sbr.rel (0) target = $region17
    $region16: #{_nac_forward_impl.1} parent=1 // pred_region
      _
    $region17: #{_nac_forward_impl.1} parent=1 // pred_fallthru
      _
    %v18 = vld [vmem:[%s0] sm:$0xf]
    %v19 = vld [vmem:[%s1] sm:$0xf]
    %v20 = vld [vmem:[%s1 + $0x4] sm:$0xf]
    %v21 = vld [vmem:[%s1 + $0x8] sm:$0xf]
    %v22 = vld [vmem:[%s1 + $0xc] sm:$0xf]
    %v23 = vld [vmem:[%s1 + $0x10] sm:$0xf]
    %v24 = vld [vmem:[%s1 + $0x14] sm:$0xf]
    %v25 = vld [vmem:[%s1 + $0x18] sm:$0xf]
    %v26 = vld [vmem:[%s1 + $0x1c] sm:$0xf]
    %v27 = vld [vmem:[%s1 + $0x20] sm:$0xf]
    %v28 = vld [vmem:[%s1 + $0x24] sm:$0xf]
    %v29 = vld [vmem:[%s1 + $0x28] sm:$0xf]
    %v30 = vld [vmem:[%s1 + $0x2c] sm:$0xf]
    %v31 = vld [vmem:[%s1 + $0x30] sm:$0xf]
    %v32 = vld [vmem:[%s1 + $0x34] sm:$0xf]
    %v33 = vld [vmem:[%s1 + $0x38] sm:$0xf]
    %v34 = vld [vmem:[%s1 + $0x3c] sm:$0xf]
    %v51 = vunpack.c.l.b16 %v19
    %v52 = vunpack.c.l.b16 %v20
    %v53 = vunpack.c.l.b16 %v21
    %v54 = vunpack.c.l.b16 %v22
    %v55 = vunpack.c.l.b16 %v23
    %v56 = vunpack.c.l.b16 %v24
    %v57 = vunpack.c.l.b16 %v25
    %v58 = vunpack.c.l.b16 %v26
    %v59 = vunpack.c.l.b16 %v27
    %v60 = vunpack.c.l.b16 %v28
    %v61 = vunpack.c.l.b16 %v29
    %v62 = vunpack.c.l.b16 %v30
    %v63 = vunpack.c.l.b16 %v31
    %v64 = vunpack.c.l.b16 %v32
    %v65 = vunpack.c.l.b16 %v33
    %v66 = vunpack.c.l.b16 %v34
    %v67 = vpack.c.b16 %v52, %v51
    %v68 = vpack.c.b16 %v54, %v53
    %v69 = vpack.c.b16 %v56, %v55
    %v70 = vpack.c.b16 %v58, %v57
    %v71 = vpack.c.b16 %v60, %v59
    %v72 = vpack.c.b16 %v62, %v61
    %v73 = vpack.c.b16 %v64, %v63
    %v74 = vpack.c.b16 %v66, %v65
    %83 = vmatpush.bf16.msra.mxu0 %v74
    %84 = vmatpush.bf16.msra.mxu0 %v73
    %85 = vmatpush.bf16.msra.mxu0 %v72
    %86 = vmatpush.bf16.msra.mxu0 %v71
    %87 = vmatpush.bf16.msra.mxu0 %v70
    %88 = vmatpush.bf16.msra.mxu0 %v69
    %89 = vmatpush.bf16.msra.mxu0 %v68
    %90 = vmatpush.bf16.msra.mxu0 %v67
    %91 = vmatmul.bf16.gmra.mxu0 %v18
    %v92 = vpop.f32.mrf.mxu0
    %v93 = vadd.f32 0.0, %v92
    %v94 = vpop.f32.mrf.mxu0
    %95 = vdwg.mxu0
    %v96 = vpack.c.bf16 %v93, %v93
    %v97 = vld [vmem:[%s2] sm:$0xf]
    %v98 = vld [vmem:[%s2 + $0x4] sm:$0xf]
    %v99 = vld [vmem:[%s2 + $0x8] sm:$0xf]
    %v100 = vld [vmem:[%s2 + $0xc] sm:$0xf]
    %v101 = vld [vmem:[%s2 + $0x10] sm:$0xf]
    %v102 = vld [vmem:[%s2 + $0x14] sm:$0xf]
    %v103 = vld [vmem:[%s2 + $0x18] sm:$0xf]
    %v104 = vld [vmem:[%s2 + $0x1c] sm:$0xf]
    %v105 = vld [vmem:[%s2 + $0x20] sm:$0xf]
    %v106 = vld [vmem:[%s2 + $0x24] sm:$0xf]
    %v107 = vld [vmem:[%s2 + $0x28] sm:$0xf]
    %v108 = vld [vmem:[%s2 + $0x2c] sm:$0xf]
    %v109 = vld [vmem:[%s2 + $0x30] sm:$0xf]
    %v110 = vld [vmem:[%s2 + $0x34] sm:$0xf]
    %v111 = vld [vmem:[%s2 + $0x38] sm:$0xf]
    %v112 = vld [vmem:[%s2 + $0x3c] sm:$0xf]
    %v129 = vunpack.c.l.b16 %v97
    %v130 = vunpack.c.l.b16 %v98
    %v131 = vunpack.c.l.b16 %v99
    %v132 = vunpack.c.l.b16 %v100
    %v133 = vunpack.c.l.b16 %v101
    %v134 = vunpack.c.l.b16 %v102
    %v135 = vunpack.c.l.b16 %v103
    %v136 = vunpack.c.l.b16 %v104
    %v137 = vunpack.c.l.b16 %v105
    %v138 = vunpack.c.l.b16 %v106
    %v139 = vunpack.c.l.b16 %v107
    %v140 = vunpack.c.l.b16 %v108
    %v141 = vunpack.c.l.b16 %v109
    %v142 = vunpack.c.l.b16 %v110
    %v143 = vunpack.c.l.b16 %v111
    %v144 = vunpack.c.l.b16 %v112
    %v145 = vpack.c.b16 %v130, %v129
    %v146 = vpack.c.b16 %v132, %v131
    %v147 = vpack.c.b16 %v134, %v133
    %v148 = vpack.c.b16 %v136, %v135
    %v149 = vpack.c.b16 %v138, %v137
    %v150 = vpack.c.b16 %v140, %v139
    %v151 = vpack.c.b16 %v142, %v141
    %v152 = vpack.c.b16 %v144, %v143
    %161 = vmatpush.bf16.msra.mxu0 %v152
    %162 = vmatpush.bf16.msra.mxu0 %v151
    %163 = vmatpush.bf16.msra.mxu0 %v150
    %164 = vmatpush.bf16.msra.mxu0 %v149
    %165 = vmatpush.bf16.msra.mxu0 %v148
    %166 = vmatpush.bf16.msra.mxu0 %v147
    %167 = vmatpush.bf16.msra.mxu0 %v146
    %168 = vmatpush.bf16.msra.mxu0 %v145
    %169 = vmatmul.bf16.gmra.mxu0 %v96
    %v170 = vpop.f32.mrf.mxu0
    %v171 = vadd.f32 0.0, %v170
    %v172 = vpop.f32.mrf.mxu0
    %173 = vdwg.mxu0
    %v174 = vpack.c.bf16 %v171, %v171
    %v175 = vld [vmem:[%s3] sm:$0xf]
    %v176 = vld [vmem:[%s3 + $0x4] sm:$0xf]
    %v177 = vld [vmem:[%s3 + $0x8] sm:$0xf]
    %v178 = vld [vmem:[%s3 + $0xc] sm:$0xf]
    %v179 = vld [vmem:[%s3 + $0x10] sm:$0xf]
    %v180 = vld [vmem:[%s3 + $0x14] sm:$0xf]
    %v181 = vld [vmem:[%s3 + $0x18] sm:$0xf]
    %v182 = vld [vmem:[%s3 + $0x1c] sm:$0xf]
    %v183 = vld [vmem:[%s3 + $0x20] sm:$0xf]
    %v184 = vld [vmem:[%s3 + $0x24] sm:$0xf]
    %v185 = vld [vmem:[%s3 + $0x28] sm:$0xf]
    %v186 = vld [vmem:[%s3 + $0x2c] sm:$0xf]
    %v187 = vld [vmem:[%s3 + $0x30] sm:$0xf]
    %v188 = vld [vmem:[%s3 + $0x34] sm:$0xf]
    %v189 = vld [vmem:[%s3 + $0x38] sm:$0xf]
    %v190 = vld [vmem:[%s3 + $0x3c] sm:$0xf]
    %v207 = vunpack.c.l.b16 %v175
    %v208 = vunpack.c.l.b16 %v176
    %v209 = vunpack.c.l.b16 %v177
    %v210 = vunpack.c.l.b16 %v178
    %v211 = vunpack.c.l.b16 %v179
    %v212 = vunpack.c.l.b16 %v180
    %v213 = vunpack.c.l.b16 %v181
    %v214 = vunpack.c.l.b16 %v182
    %v215 = vunpack.c.l.b16 %v183
    %v216 = vunpack.c.l.b16 %v184
    %v217 = vunpack.c.l.b16 %v185
    %v218 = vunpack.c.l.b16 %v186
    %v219 = vunpack.c.l.b16 %v187
    %v220 = vunpack.c.l.b16 %v188
    %v221 = vunpack.c.l.b16 %v189
    %v222 = vunpack.c.l.b16 %v190
    %v223 = vpack.c.b16 %v208, %v207
    %v224 = vpack.c.b16 %v210, %v209
    %v225 = vpack.c.b16 %v212, %v211
    %v226 = vpack.c.b16 %v214, %v213
    %v227 = vpack.c.b16 %v216, %v215
    %v228 = vpack.c.b16 %v218, %v217
    %v229 = vpack.c.b16 %v220, %v219
    %v230 = vpack.c.b16 %v222, %v221
    %239 = vmatpush.bf16.msra.mxu0 %v230
    %240 = vmatpush.bf16.msra.mxu0 %v229
    %241 = vmatpush.bf16.msra.mxu0 %v228
    %242 = vmatpush.bf16.msra.mxu0 %v227
    %243 = vmatpush.bf16.msra.mxu0 %v226
    %244 = vmatpush.bf16.msra.mxu0 %v225
    %245 = vmatpush.bf16.msra.mxu0 %v224
    %246 = vmatpush.bf16.msra.mxu0 %v223
    %247 = vmatmul.bf16.gmra.mxu0 %v174
    %v248 = vpop.f32.mrf.mxu0
    %v249 = vadd.f32 0.0, %v248
    %v250 = vpop.f32.mrf.mxu0
    %251 = vdwg.mxu0
    %252 = vst [vmem:[#allocation2] sm:$0xff] %v249
    // Predicated region
    $region18: #{_nac_forward_impl.1} parent=1 // pred_check
      _
    $region19: #{_nac_forward_impl.1} parent=1 // pred_check_branch
      %254 = sbr.rel (0) target = $region21
    $region20: #{_nac_forward_impl.1} parent=1 // pred_region
      %256 = vsyncadd [#allocation3], 0
      %s258 = sshll.u32 [#allocation2], 4
      %s259 = int_to_ptr.vmem [resolvable:$true] %s258
      %s260 = sshll.u32 %s4, 4
      %s261 = int_to_ptr.hbm [resolvable:$true] %s260
      %263 = dma.vmem_to_hbm [thread:$0]  %s259, 128, %s261, [#allocation3]
    $region21: #{_nac_forward_impl.1} parent=1 // pred_fallthru
      _
    // Predicated region
    $region22: #{_nac_forward_impl.1} parent=1 // pred_check
      _
    $region23: #{_nac_forward_impl.1} parent=1 // pred_check_branch
      %265 = sbr.rel (0) target = $region25
    $region24: #{_nac_forward_impl.1} parent=1 // pred_region
      %267 = dma.done [#allocation3], 128
    $region25: #{_nac_forward_impl.1} parent=1 // pred_fallthru
      _
    %268 = vsyncpa [#allocation3], 1

</llo_original>
